<compile_context>
chip_gen: v6e
topology: v6e:2x2x1
jax: 0.10.0
libtpu: 0.0.40
codegen_flags: <defaults>
</compile_context>

<pallas_src>
import functools

import jax
import jax.numpy as jnp
from jax.experimental import pallas as pl
from jax.experimental.pallas import tpu as pltpu


# --------------------------------------------------------------------------
# Kernel
# --------------------------------------------------------------------------
def _mlp_kernel(x_ref, w1_ref, b1_ref, w2_ref, b2_ref, o_ref):
    # hidden = relu(x @ W1 + b1); accumulate in f32 on the MXU.
    h = jnp.dot(x_ref[...], w1_ref[...], preferred_element_type=jnp.float32)
    h = jnp.maximum(h + b1_ref[...], 0.0)          # (TB,H) + (1,H), f32

    # Second matmul in the weights' dtype (explicit precision policy): only
    # downcast the ReLU activations when the weights are narrower than f32.
    if w2_ref.dtype != h.dtype:
        h = h.astype(w2_ref.dtype)

    # out = h @ W2 + b2; bias add and final cast in f32.
    y = jnp.dot(h, w2_ref[...], preferred_element_type=jnp.float32)
    o_ref[...] = (y + b2_ref[...]).astype(o_ref.dtype)


# --------------------------------------------------------------------------
# Wrapper
# --------------------------------------------------------------------------
def _cdiv(a, b):
    return -(-a // b)


def _round_up(n, m):
    return _cdiv(n, m) * m


@functools.partial(jax.jit, static_argnames=("block_batch", "compute_dtype"))
def mlp_forward(x, w1, b1, w2, b2, *, block_batch=1024, compute_dtype=None):
    """Fused MLP forward.

    x: (B, F); w1: (F, H); b1: (1, H) or (H,); w2: (H, O); b2: (1, O) or (O,)
    Returns (B, O) in x.dtype.

    compute_dtype: optional dtype (e.g. jnp.bfloat16) for x / w1 / w2 on the
    MXU path -- recommended on v6e/v7x when accuracy allows.  Biases and
    accumulation stay f32.
    """
    B, F = x.shape
    H = w1.shape[1]
    O = w2.shape[1]
    out_dtype = x.dtype

    if compute_dtype is not None:
        x = x.astype(compute_dtype)
        w1 = w1.astype(compute_dtype)
        w2 = w2.astype(compute_dtype)
    b1 = b1.reshape(1, -1).astype(jnp.float32)
    b2 = b2.reshape(1, -1).astype(jnp.float32)

    SUBLANE = 8
    # Right-size the batch tile: aim for `block_batch` rows/step, but derive
    # TB from ceil(B / n_steps) so batch padding stays < TB (e.g. B=300 pads
    # to 304, not 512).  Force >= 2 steps (when B allows) so the "parallel"
    # batch axis can shard across both v7x TensorCores.
    n_steps = _cdiv(B, block_batch)
    if B >= 2 * SUBLANE:
        n_steps = max(n_steps, 2)
    TB = _round_up(_cdiv(B, n_steps), SUBLANE)
    Bp = _round_up(B, TB)
    grid = (Bp // TB,)

    if Bp != B:
        # Only the batch axis is ever padded (by < TB rows).  Padded rows
        # compute relu(b1) @ W2 + b2 and are sliced off before return.
        x = jnp.pad(x, ((0, Bp - B), (0, 0)))

    # Advisory cost for XLA's scheduler: real flops / real bytes.
    itemsize = lambda a: jnp.dtype(a.dtype).itemsize
    cost = pl.CostEstimate(
        flops=2 * Bp * (F * H + H * O),
        transcendentals=0,
        bytes_accessed=(Bp * F * itemsize(x)
                        + F * H * itemsize(w1) + H * itemsize(b1)
                        + H * O * itemsize(w2) + O * itemsize(b2)
                        + Bp * O * jnp.dtype(out_dtype).itemsize),
    )

    out_padded = pl.pallas_call(
        _mlp_kernel,
        out_shape=jax.ShapeDtypeStruct((Bp, O), out_dtype),
        grid_spec=pltpu.PrefetchScalarGridSpec(
            num_scalar_prefetch=0,
            grid=grid,
            in_specs=[
                # x: tiled over batch; last dim F equals the full array dim,
                # so no lane padding is required (real bytes only).
                pl.BlockSpec((TB, F), lambda i: (i, 0)),
                # Weights / biases: whole (unpadded) arrays, pinned to block
                # (0,0) -> resident in VMEM across all grid steps.
                pl.BlockSpec((F, H), lambda i: (0, 0)),   # W1
                pl.BlockSpec((1, H), lambda i: (0, 0)),   # b1
                pl.BlockSpec((H, O), lambda i: (0, 0)),   # W2
                pl.BlockSpec((1, O), lambda i: (0, 0)),   # b2
            ],
            # Output written at its real width O (full-array last dim).
            out_specs=pl.BlockSpec((TB, O), lambda i: (i, 0)),
        ),
        compiler_params=pltpu.CompilerParams(
            dimension_semantics=("parallel",)),   # megacore-shardable on v7x
        cost_estimate=cost,
    )(x, w1, b1, w2, b2)

    return out_padded if Bp == B else out_padded[:B]


# --------------------------------------------------------------------------
# Param init (matches torch.nn.Linear's U(-1/sqrt(fan_in), +) scheme; weights
# stored pre-transposed as (in, out) so the kernel does straight x @ W).
# --------------------------------------------------------------------------
def init_params(key, n_feature, n_hidden, n_output, dtype=jnp.float32):
    k1, k2, k3, k4 = jax.random.split(key, 4)
    bound1 = 1.0 / (n_feature ** 0.5)
    bound2 = 1.0 / (n_hidden ** 0.5)
    w1 = jax.random.uniform(k1, (n_feature, n_hidden), dtype, -bound1, bound1)
    b1 = jax.random.uniform(k2, (1, n_hidden), dtype, -bound1, bound1)
    w2 = jax.random.uniform(k3, (n_hidden, n_output), dtype, -bound2, bound2)
    b2 = jax.random.uniform(k4, (1, n_output), dtype, -bound2, bound2)
    return w1, b1, w2, b2


def _reference(x, w1, b1, w2, b2):
    return jnp.maximum(x @ w1 + b1, 0.0) @ w2 + b2


if __name__ == "__main__":
    key = jax.random.PRNGKey(0)
    kx, kp, kx2 = jax.random.split(key, 3)

    n_feature, n_hidden, n_output = 32, 64, 16
    w1, b1, w2, b2 = init_params(kp, n_feature, n_hidden, n_output)

    # --- small batch (module's toy configuration): single 8-row step -------
    batch = 8
    x = jax.random.normal(kx, (batch, n_feature), jnp.float32)
    out = jax.block_until_ready(mlp_forward(x, w1, b1, w2, b2))
    ref = _reference(x, w1, b1, w2, b2)
    assert out.shape == (batch, n_output)
    assert jnp.allclose(out, ref, atol=1e-5, rtol=1e-5)

    # --- larger, non-multiple batch: exercises right-sized batch tiling ----
    # (B=300 -> 2 steps of TB=152, padded to 304; both TCs used on v7x.)
    batch2 = 300
    x2 = jax.random.normal(kx2, (batch2, n_feature), jnp.float32)
    out2 = jax.block_until_ready(mlp_forward(x2, w1, b1, w2, b2))
    ref2 = _reference(x2, w1, b1, w2, b2)
    assert out2.shape == (batch2, n_output)
    assert jnp.allclose(out2, ref2, atol=1e-5, rtol=1e-5)

    # --- bf16 compute path (recommended fast path on v6e/v7x) --------------
    out_bf16 = jax.block_until_ready(
        mlp_forward(x2, w1, b1, w2, b2, compute_dtype=jnp.bfloat16))
    assert out_bf16.shape == (batch2, n_output)
    rel_err = float(jnp.max(jnp.abs(out_bf16 - ref2))
                    / (jnp.max(jnp.abs(ref2)) + 1e-6))
    assert rel_err < 5e-2, rel_err

    print("KERNEL_OK")
</pallas_src>

<mosaic_0001>
module attributes {stable_mosaic.version = 11 : i64} {
  func.func @_mlp_kernel(%arg0: i32, %arg1: memref<8x32xf32, #tpu.memory_space<vmem>>, %arg2: memref<32x64xf32, #tpu.memory_space<vmem>>, %arg3: memref<1x64xf32, #tpu.memory_space<vmem>>, %arg4: memref<64x16xf32, #tpu.memory_space<vmem>>, %arg5: memref<1x16xf32, #tpu.memory_space<vmem>>, %arg6: memref<8x16xf32, #tpu.memory_space<vmem>>) attributes {dimension_semantics = [#tpu.dimension_semantics<parallel>], iteration_bounds = array<i64: 1>, scalar_prefetch = 0 : i64, scratch_operands = 0 : i64, tpu.core_type = #tpu.core_type<tc>, window_params = [{transform_indices = @transform_0, window_bounds = array<i64: 8, 32>}, {pipeline_mode = #tpu.pipeline_mode<synchronous>, transform_indices = @transform_1, window_bounds = array<i64: 32, 64>}, {pipeline_mode = #tpu.pipeline_mode<synchronous>, transform_indices = @transform_2, window_bounds = array<i64: 1, 64>}, {pipeline_mode = #tpu.pipeline_mode<synchronous>, transform_indices = @transform_3, window_bounds = array<i64: 64, 16>}, {pipeline_mode = #tpu.pipeline_mode<synchronous>, transform_indices = @transform_4, window_bounds = array<i64: 1, 16>}, {transform_indices = @transform_5, window_bounds = array<i64: 8, 16>}]} {
    %c0 = arith.constant 0 : index
    %c0_0 = arith.constant 0 : index
    %0 = vector.load %arg1[%c0, %c0_0] : memref<8x32xf32, #tpu.memory_space<vmem>>, vector<8x32xf32>
    %c0_1 = arith.constant 0 : index
    %c0_2 = arith.constant 0 : index
    %1 = vector.load %arg2[%c0_1, %c0_2] : memref<32x64xf32, #tpu.memory_space<vmem>>, vector<32x64xf32>
    %cst = arith.constant dense<0.000000e+00> : vector<8x64xf32>
    %2 = tpu.matmul %0, %1, %cst {dimension_numbers = #tpu.dot_dimension_numbers<[1], [0], [0], [1], [0, 0, 1, 1], [], []>} : vector<8x32xf32>, vector<32x64xf32>, vector<8x64xf32> -> vector<8x64xf32>
    %c0_3 = arith.constant 0 : index
    %c0_4 = arith.constant 0 : index
    %3 = vector.load %arg3[%c0_3, %c0_4] : memref<1x64xf32, #tpu.memory_space<vmem>>, vector<1x64xf32>
    %4 = vector.broadcast %3 : vector<1x64xf32> to vector<8x64xf32>
    %5 = arith.addf %2, %4 : vector<8x64xf32>
    %cst_5 = arith.constant 0.000000e+00 : f32
    %6 = vector.broadcast %cst_5 : f32 to vector<8x64xf32>
    %7 = arith.maximumf %5, %6 : vector<8x64xf32>
    %c0_6 = arith.constant 0 : index
    %c0_7 = arith.constant 0 : index
    %8 = vector.load %arg4[%c0_6, %c0_7] : memref<64x16xf32, #tpu.memory_space<vmem>>, vector<64x16xf32>
    %cst_8 = arith.constant dense<0.000000e+00> : vector<8x16xf32>
    %9 = tpu.matmul %7, %8, %cst_8 {dimension_numbers = #tpu.dot_dimension_numbers<[1], [0], [0], [1], [0, 0, 1, 1], [], []>} : vector<8x64xf32>, vector<64x16xf32>, vector<8x16xf32> -> vector<8x16xf32>
    %c0_9 = arith.constant 0 : index
    %c0_10 = arith.constant 0 : index
    %10 = vector.load %arg5[%c0_9, %c0_10] : memref<1x16xf32, #tpu.memory_space<vmem>>, vector<1x16xf32>
    %11 = vector.broadcast %10 : vector<1x16xf32> to vector<8x16xf32>
    %12 = arith.addf %9, %11 : vector<8x16xf32>
    %c0_11 = arith.constant 0 : index
    %c0_12 = arith.constant 0 : index
    %13 = vector.load %arg6[%c0_11, %c0_12] : memref<8x16xf32, #tpu.memory_space<vmem>>, vector<8x16xf32>
    tpu.vector_store %arg6[%c0_11, %c0_12], %12 {strides = array<i32>} : memref<8x16xf32, #tpu.memory_space<vmem>>, vector<8x16xf32>,
    return
  }
  func.func @transform_0(%arg0: i32) -> (i32, i32) {
    %c0_i32 = arith.constant 0 : i32
    %c0_i32_0 = arith.constant 0 : i32
    return %arg0, %c0_i32 : i32, i32
  }
  func.func @transform_1(%arg0: i32) -> (i32, i32) {
    %c0_i32 = arith.constant 0 : i32
    %c0_i32_0 = arith.constant 0 : i32
    %c0_i32_1 = arith.constant 0 : i32
    return %c0_i32, %c0_i32_0 : i32, i32
  }
  func.func @transform_2(%arg0: i32) -> (i32, i32) {
    %c0_i32 = arith.constant 0 : i32
    %c0_i32_0 = arith.constant 0 : i32
    %c0_i32_1 = arith.constant 0 : i32
    return %c0_i32, %c0_i32_0 : i32, i32
  }
  func.func @transform_3(%arg0: i32) -> (i32, i32) {
    %c0_i32 = arith.constant 0 : i32
    %c0_i32_0 = arith.constant 0 : i32
    %c0_i32_1 = arith.constant 0 : i32
    return %c0_i32, %c0_i32_0 : i32, i32
  }
  func.func @transform_4(%arg0: i32) -> (i32, i32) {
    %c0_i32 = arith.constant 0 : i32
    %c0_i32_0 = arith.constant 0 : i32
    %c0_i32_1 = arith.constant 0 : i32
    return %c0_i32, %c0_i32_0 : i32, i32
  }
  func.func @transform_5(%arg0: i32) -> (i32, i32) {
    %c0_i32 = arith.constant 0 : i32
    %c0_i32_0 = arith.constant 0 : i32
    return %arg0, %c0_i32 : i32, i32
  }
}

</mosaic_0001>

<llo_original>
// kernel: mlp_forward.1
$region0: #{mlp_forward.1}
  #allocation0 [shape = 'u32[]', space=smem, size = 0x4, offset = 0x4, fixed_abs, tag = 'smem constant byte address 0x4 - core index']
  #allocation1 [shape = 'u32[144,128]{1,0:T(1,128)}', space=vmem, size = 0x12000, scoped, tag = 'internal scratch']
  %s0 = inlined_call_operand.vmem [shape: f32[8,32], index: 0, kind: input, shape index: {}]
  %s1 = inlined_call_operand.vmem [shape: f32[32,64], index: 1, kind: input, shape index: {}]
  %s2 = inlined_call_operand.vmem [shape: f32[1,64], index: 2, kind: input, shape index: {}]
  %s3 = inlined_call_operand.vmem [shape: f32[64,16], index: 3, kind: input, shape index: {}]
  %s4 = inlined_call_operand.vmem [shape: f32[1,16], index: 4, kind: input, shape index: {}]
  %s5 = inlined_call_operand.hbm [shape: f32[8,16], index: 5, kind: output, shape index: {}]
  %s6 = sld [smem:[#allocation0]]
  $region30: #{mlp_forward.1} parent=0
    _
  %s8 = ssub.s32 1, %s6
  %s9 = scalar_select 0, %s8, %s6
  $region1: #{mlp_forward.1} parent=0
    #allocation2 [shape = 'u8[4096]{0}', space=vmem, size = 0x1000, scoped, tag = 'output window, operand 0, single buffered']
    #allocation3 [shape = 's32[1]{0}', space=sflag, size = 0x4, scoped, tag = 'scoped memory for mlp_forward.1']
    %10 = vsyncpa [#allocation3], 0
    // Predicated region
    $region2: #{mlp_forward.1} parent=1 // pred_check
      _
    $region3: #{mlp_forward.1} parent=1 // pred_check_branch
      %12 = sbr.rel (0) target = $region5
    $region4: #{mlp_forward.1} parent=1 // pred_region
      _
    $region5: #{mlp_forward.1} parent=1 // pred_fallthru
      _
    // Predicated region
    $region6: #{mlp_forward.1} parent=1 // pred_check
      _
    $region7: #{mlp_forward.1} parent=1 // pred_check_branch
      %14 = sbr.rel (0) target = $region9
    $region8: #{mlp_forward.1} parent=1 // pred_region
      _
    $region9: #{mlp_forward.1} parent=1 // pred_fallthru
      _
    // Predicated region
    $region10: #{mlp_forward.1} parent=1 // pred_check
      _
    $region11: #{mlp_forward.1} parent=1 // pred_check_branch
      %16 = sbr.rel (0) target = $region13
    $region12: #{mlp_forward.1} parent=1 // pred_region
      _
    $region13: #{mlp_forward.1} parent=1 // pred_fallthru
      _
    // Predicated region
    $region14: #{mlp_forward.1} parent=1 // pred_check
      _
    $region15: #{mlp_forward.1} parent=1 // pred_check_branch
      %18 = sbr.rel (0) target = $region17
    $region16: #{mlp_forward.1} parent=1 // pred_region
      _
    $region17: #{mlp_forward.1} parent=1 // pred_fallthru
      _
    // Predicated region
    $region18: #{mlp_forward.1} parent=1 // pred_check
      _
    $region19: #{mlp_forward.1} parent=1 // pred_check_branch
      %20 = sbr.rel (0) target = $region21
    $region20: #{mlp_forward.1} parent=1 // pred_region
      _
    $region21: #{mlp_forward.1} parent=1 // pred_fallthru
      _
    %v21 = vld [vmem:[%s0] sm:$0xff]
    %v22 = vld [vmem:[%s1] sm:$0xff]
    %v23 = vld [vmem:[%s1 + $0x8] sm:$0xff]
    %v24 = vld [vmem:[%s1 + $0x10] sm:$0xff]
    %v25 = vld [vmem:[%s1 + $0x18] sm:$0xff]
    %v26 = vld [vmem:[%s2] sm:$0x1]
    %v28 = vlaneseq
    %v29 = vshrl.u32 %v28, 7
    %v30 = vsub.s32 0, %v29
    %v31 = vrot.slane %v26, %v30
    %vm33 = vcmask 261120
    %v35 = vsel %vm33, %v21, 0
    %37 = vmatprep.subr.mxu0 0.0
    %38 = vmatpush1.msra.mxu0 0.0
    %39 = vmatprep.subr.mxu0 0.0
    %40 = vmatpush1.msra.mxu0 0.0
    %41 = vmatprep.subr.mxu0 0.0
    %42 = vmatpush1.msra.mxu0 0.0
    %43 = vmatprep.subr.mxu0 0.0
    %44 = vmatpush1.msra.mxu0 0.0
    %45 = vmatprep.subr.mxu0 0.0
    %46 = vmatpush1.msra.mxu0 0.0
    %47 = vmatprep.subr.mxu0 0.0
    %48 = vmatpush1.msra.mxu0 0.0
    %49 = vmatprep.subr.mxu0 0.0
    %50 = vmatpush1.msra.mxu0 0.0
    %51 = vmatprep.subr.mxu0 0.0
    %52 = vmatpush1.msra.mxu0 0.0
    %53 = vmatprep.subr.mxu0 0.0
    %54 = vmatpush1.msra.mxu0 0.0
    %55 = vmatprep.subr.mxu0 0.0
    %56 = vmatpush1.msra.mxu0 0.0
    %57 = vmatprep.subr.mxu0 0.0
    %58 = vmatpush1.msra.mxu0 0.0
    %59 = vmatprep.subr.mxu0 0.0
    %60 = vmatpush1.msra.mxu0 0.0
    %61 = vmatprep.subr.mxu0 0.0
    %62 = vmatpush1.msra.mxu0 %v25
    %63 = vmatprep.subr.mxu0 0.0
    %64 = vmatpush1.msra.mxu0 %v24
    %65 = vmatprep.subr.mxu0 0.0
    %66 = vmatpush1.msra.mxu0 %v23
    %67 = vmatprep.subr.mxu0 0.0
    %68 = vmatpush1.msra.mxu0 %v22
    %69 = vmatprep.subr.mxu0 0.0
    %70 = vmatpush2.msra.mxu0 0.0
    %71 = vmatprep.subr.mxu0 0.0
    %72 = vmatpush2.msra.mxu0 0.0
    %73 = vmatprep.subr.mxu0 0.0
    %74 = vmatpush2.msra.mxu0 0.0
    %75 = vmatprep.subr.mxu0 0.0
    %76 = vmatpush2.msra.mxu0 0.0
    %77 = vmatprep.subr.mxu0 0.0
    %78 = vmatpush2.msra.mxu0 0.0
    %79 = vmatprep.subr.mxu0 0.0
    %80 = vmatpush2.msra.mxu0 0.0
    %81 = vmatprep.subr.mxu0 0.0
    %82 = vmatpush2.msra.mxu0 0.0
    %83 = vmatprep.subr.mxu0 0.0
    %84 = vmatpush2.msra.mxu0 0.0
    %85 = vmatprep.subr.mxu0 0.0
    %86 = vmatpush2.msra.mxu0 0.0
    %87 = vmatprep.subr.mxu0 0.0
    %88 = vmatpush2.msra.mxu0 0.0
    %89 = vmatprep.subr.mxu0 0.0
    %90 = vmatpush2.msra.mxu0 0.0
    %91 = vmatprep.subr.mxu0 0.0
    %92 = vmatpush2.msra.mxu0 0.0
    %93 = vmatprep.subr.mxu0 0.0
    %94 = vmatpush2.msra.mxu0 0.0
    %95 = vmatprep.subr.mxu0 0.0
    %96 = vmatpush2.msra.mxu0 0.0
    %97 = vmatprep.subr.mxu0 0.0
    %98 = vmatpush2.msra.mxu0 0.0
    %99 = vmatprep.subr.mxu0 0.0
    %100 = vmatpush2.msra.mxu0 0.0
    %101 = vmatprep.mubr.f32.mxu0 0.0
    %102 = vmatmul.mubr.f32.gmra.mxu0 %v35
    %v103 = vpop.f32.mrf.mxu0
    %v104 = vadd.f32 %v31, %v103
    %v105 = vpop.f32.mrf.mxu0
    %106 = vdwg.mxu0
    %v107 = vmax.f32 %v104, 0.0
    %v108 = vld [vmem:[%s3] sm:$0xff]
    %v109 = vld [vmem:[%s3 + $0x8] sm:$0xff]
    %v110 = vld [vmem:[%s3 + $0x10] sm:$0xff]
    %v111 = vld [vmem:[%s3 + $0x18] sm:$0xff]
    %v112 = vld [vmem:[%s3 + $0x20] sm:$0xff]
    %v113 = vld [vmem:[%s3 + $0x28] sm:$0xff]
    %v114 = vld [vmem:[%s3 + $0x30] sm:$0xff]
    %v115 = vld [vmem:[%s3 + $0x38] sm:$0xff]
    %v116 = vld [vmem:[%s4] sm:$0x1]
    %v118 = vlaneseq
    %v119 = vshrl.u32 %v118, 7
    %v120 = vsub.s32 0, %v119
    %v121 = vrot.slane %v116, %v120
    %vm123 = vcmask 523264
    %v125 = vsel %vm123, %v107, 0
    %127 = vmatprep.subr.mxu0 0.0
    %128 = vmatpush1.msra.mxu0 0.0
    %129 = vmatprep.subr.mxu0 0.0
    %130 = vmatpush1.msra.mxu0 0.0
    %131 = vmatprep.subr.mxu0 0.0
    %132 = vmatpush1.msra.mxu0 0.0
    %133 = vmatprep.subr.mxu0 0.0
    %134 = vmatpush1.msra.mxu0 0.0
    %135 = vmatprep.subr.mxu0 0.0
    %136 = vmatpush1.msra.mxu0 0.0
    %137 = vmatprep.subr.mxu0 0.0
    %138 = vmatpush1.msra.mxu0 0.0
    %139 = vmatprep.subr.mxu0 0.0
    %140 = vmatpush1.msra.mxu0 0.0
    %141 = vmatprep.subr.mxu0 0.0
    %142 = vmatpush1.msra.mxu0 0.0
    %143 = vmatprep.subr.mxu0 0.0
    %144 = vmatpush1.msra.mxu0 %v115
    %145 = vmatprep.subr.mxu0 0.0
    %146 = vmatpush1.msra.mxu0 %v114
    %147 = vmatprep.subr.mxu0 0.0
    %148 = vmatpush1.msra.mxu0 %v113
    %149 = vmatprep.subr.mxu0 0.0
    %150 = vmatpush1.msra.mxu0 %v112
    %151 = vmatprep.subr.mxu0 0.0
    %152 = vmatpush1.msra.mxu0 %v111
    %153 = vmatprep.subr.mxu0 0.0
    %154 = vmatpush1.msra.mxu0 %v110
    %155 = vmatprep.subr.mxu0 0.0
    %156 = vmatpush1.msra.mxu0 %v109
    %157 = vmatprep.subr.mxu0 0.0
    %158 = vmatpush1.msra.mxu0 %v108
    %159 = vmatprep.subr.mxu0 0.0
    %160 = vmatpush2.msra.mxu0 0.0
    %161 = vmatprep.subr.mxu0 0.0
    %162 = vmatpush2.msra.mxu0 0.0
    %163 = vmatprep.subr.mxu0 0.0
    %164 = vmatpush2.msra.mxu0 0.0
    %165 = vmatprep.subr.mxu0 0.0
    %166 = vmatpush2.msra.mxu0 0.0
    %167 = vmatprep.subr.mxu0 0.0
    %168 = vmatpush2.msra.mxu0 0.0
    %169 = vmatprep.subr.mxu0 0.0
    %170 = vmatpush2.msra.mxu0 0.0
    %171 = vmatprep.subr.mxu0 0.0
    %172 = vmatpush2.msra.mxu0 0.0
    %173 = vmatprep.subr.mxu0 0.0
    %174 = vmatpush2.msra.mxu0 0.0
    %175 = vmatprep.subr.mxu0 0.0
    %176 = vmatpush2.msra.mxu0 0.0
    %177 = vmatprep.subr.mxu0 0.0
    %178 = vmatpush2.msra.mxu0 0.0
    %179 = vmatprep.subr.mxu0 0.0
    %180 = vmatpush2.msra.mxu0 0.0
    %181 = vmatprep.subr.mxu0 0.0
    %182 = vmatpush2.msra.mxu0 0.0
    %183 = vmatprep.subr.mxu0 0.0
    %184 = vmatpush2.msra.mxu0 0.0
    %185 = vmatprep.subr.mxu0 0.0
    %186 = vmatpush2.msra.mxu0 0.0
    %187 = vmatprep.subr.mxu0 0.0
    %188 = vmatpush2.msra.mxu0 0.0
    %189 = vmatprep.subr.mxu0 0.0
    %190 = vmatpush2.msra.mxu0 0.0
    %191 = vmatprep.mubr.f32.mxu0 0.0
    %192 = vmatmul.mubr.f32.gmra.mxu0 %v125
    %v193 = vpop.f32.mrf.mxu0
    %v194 = vadd.f32 %v121, %v193
    %v195 = vpop.f32.mrf.mxu0
    %196 = vdwg.mxu0
    %vm197 = vcmask 130048
    %198 = vst.msk [vmem:[#allocation2] sm:$0xff] %vm197, %v194
    // Predicated region
    $region22: #{mlp_forward.1} parent=1 // pred_check
      _
    $region23: #{mlp_forward.1} parent=1 // pred_check_branch
      %200 = sbr.rel (0) target = $region25
    $region24: #{mlp_forward.1} parent=1 // pred_region
      %s202 = ssub.s32 128, 128
      %203 = vsyncadd [#allocation3], %s202
      %s205 = sshll.u32 [#allocation2], 4
      %s206 = int_to_ptr.vmem [resolvable:$true] %s205
      %208 = dma.vmem_to_hbm [thread:$0]  %s206, 128, %s5, [#allocation3]
    $region25: #{mlp_forward.1} parent=1 // pred_fallthru
      _
    // Predicated region
    $region26: #{mlp_forward.1} parent=1 // pred_check
      _
    $region27: #{mlp_forward.1} parent=1 // pred_check_branch
      %210 = sbr.rel (0) target = $region29
    $region28: #{mlp_forward.1} parent=1 // pred_region
      %211 = dma.done [#allocation3], 128
    $region29: #{mlp_forward.1} parent=1 // pred_fallthru
      _
    %212 = vsyncpa [#allocation3], 1

</llo_original>
